<compile_context>
chip_gen: v6e
topology: v6e:2x2x1
jax: 0.10.0
libtpu: 0.0.40
codegen_flags: <defaults>
</compile_context>

<pallas_src>
import functools

import jax
import jax.numpy as jnp
from jax.experimental import pallas as pl
from jax.experimental.pallas import tpu as pltpu


_MAX_DMA_CHUNKS = 4  # a handful of in-flight DMAs is enough to saturate HBM BW


def _dma_copy_kernel(bounds, x_ref, o_ref, sems):
    """Pure HBM->HBM copy: issue all chunk DMAs, then wait on all of them."""
    copies = []
    for i, (lo, size) in enumerate(bounds):
        cp = pltpu.make_async_copy(
            x_ref.at[pl.ds(lo, size)],
            o_ref.at[pl.ds(lo, size)],
            sems.at[i],
        )
        cp.start()
        copies.append(cp)
    for cp in copies:
        cp.wait()


def _as_2d(x):
    """Reshape to (rows, cols), preferring a lane-dense cols when possible."""
    n = x.size
    for c in (16384, 8192, 4096, 2048, 1024, 512, 256, 128):
        if n > 0 and n % c == 0:
            return x.reshape(n // c, c)
    if x.ndim >= 2:
        rows = 1
        for s in x.shape[:-1]:
            rows *= s
        return x.reshape(rows, x.shape[-1])
    if x.ndim == 1:
        return x.reshape(1, x.shape[0])
    return x.reshape(1, 1)


def _chunk_bounds(rows, n_chunks):
    """Static (offset, size) row chunks covering [0, rows)."""
    n_chunks = max(1, min(n_chunks, rows))
    base = rows // n_chunks
    rem = rows % n_chunks
    bounds = []
    off = 0
    for i in range(n_chunks):
        size = base + (1 if i < rem else 0)
        if size > 0:
            bounds.append((off, size))
            off += size
    return tuple(bounds)


def _pallas_identity_copy(x):
    """Explicit Pallas copy of x via a single-shot HBM->HBM DMA kernel."""
    orig_shape = x.shape
    x2 = _as_2d(x)
    rows, cols = x2.shape
    bounds = _chunk_bounds(rows, _MAX_DMA_CHUNKS)
    nbytes = int(x2.size) * x2.dtype.itemsize

    out = pl.pallas_call(
        functools.partial(_dma_copy_kernel, bounds),
        out_shape=jax.ShapeDtypeStruct((rows, cols), x2.dtype),
        in_specs=[pl.BlockSpec(memory_space=pl.ANY)],
        out_specs=pl.BlockSpec(memory_space=pl.ANY),
        scratch_shapes=[pltpu.SemaphoreType.DMA((len(bounds),))],
        cost_estimate=pl.CostEstimate(
            flops=0, transcendentals=0, bytes_accessed=2 * nbytes
        ),
    )(x2)

    return out.reshape(orig_shape)


def identity(x, *args, use_pallas_copy=False, **kwargs):
    """Matches Identity.forward: returns x unchanged; extra args ignored.

    Default path returns x directly (zero HBM traffic).  Set
    use_pallas_copy=True to force the Pallas HBM->HBM DMA copy kernel
    (benchmarking / demonstration path).
    """
    del args, kwargs  # the torch module ignores them too
    if not use_pallas_copy or x.size == 0:
        return x
    return _pallas_identity_copy(x)


if __name__ == "__main__":
    key = jax.random.PRNGKey(0)

    # Main test: activation-like 4-D input; default (zero-copy) path.
    x = jax.random.normal(key, (2, 4, 16, 16), dtype=jnp.float32)
    out = jax.block_until_ready(identity(x))
    assert out.shape == x.shape and out.dtype == x.dtype
    assert jnp.array_equal(out, x)

    # Forced Pallas DMA-copy path on the same input (single-chunk DMA).
    out_k = jax.block_until_ready(identity(x, use_pallas_copy=True))
    assert out_k.shape == x.shape and out_k.dtype == x.dtype
    assert jnp.array_equal(out_k, x)

    # Odd dims + bf16 + extra args/kwargs; multi-chunk DMA path.
    x2 = jax.random.normal(jax.random.PRNGKey(1), (3, 7, 256), dtype=jnp.bfloat16)
    out2 = jax.block_until_ready(
        identity(x2, "extra_arg", use_pallas_copy=True, some_kwarg=1)
    )
    assert out2.shape == x2.shape and out2.dtype == x2.dtype
    assert jnp.array_equal(out2, x2)

    print("KERNEL_OK")
</pallas_src>

<mosaic_0001>
module attributes {stable_mosaic.version = 11 : i64} {
  func.func @_dma_copy_kernel(%arg0: memref<1x2048xf32, #tpu.memory_space<any>>, %arg1: memref<1x2048xf32, #tpu.memory_space<any>>, %arg2: memref<1x!tpu.dma_semaphore, #tpu.memory_space<semaphore_mem>>) attributes {dimension_semantics = [], scalar_prefetch = 0 : i64, scratch_operands = 1 : i64, tpu.core_type = #tpu.core_type<tc>} {
    %c0_i32 = arith.constant 0 : i32
    %c0_i32_0 = arith.constant 0 : i32
    %c0_i32_1 = arith.constant 0 : i32
    %0 = tpu.memref_slice %arg0[%c0_i32_0, %c0_i32_1] : memref<1x2048xf32, #tpu.memory_space<any>> -> memref<1x2048xf32, #tpu.memory_space<any>>
    %c0_i32_2 = arith.constant 0 : i32
    %c0_i32_3 = arith.constant 0 : i32
    %1 = tpu.memref_slice %arg1[%c0_i32_2, %c0_i32_3] : memref<1x2048xf32, #tpu.memory_space<any>> -> memref<1x2048xf32, #tpu.memory_space<any>>
    %2 = tpu.memref_slice %arg2[%c0_i32] : memref<1x!tpu.dma_semaphore, #tpu.memory_space<semaphore_mem>> -> memref<1x!tpu.dma_semaphore, #tpu.memory_space<semaphore_mem>>
    %3 = tpu.memref_squeeze %2 : memref<1x!tpu.dma_semaphore, #tpu.memory_space<semaphore_mem>> -> memref<!tpu.dma_semaphore, #tpu.memory_space<semaphore_mem>>
    tpu.enqueue_dma source(%0 : memref<1x2048xf32, #tpu.memory_space<any>>) target(%1 : memref<1x2048xf32, #tpu.memory_space<any>>) target_semaphore(%3 : memref<!tpu.dma_semaphore, #tpu.memory_space<semaphore_mem>>)
    %c0_i32_4 = arith.constant 0 : i32
    %c0_i32_5 = arith.constant 0 : i32
    %c0_i32_6 = arith.constant 0 : i32
    %4 = tpu.memref_slice %arg0[%c0_i32_5, %c0_i32_6] : memref<1x2048xf32, #tpu.memory_space<any>> -> memref<1x2048xf32, #tpu.memory_space<any>>
    %c0_i32_7 = arith.constant 0 : i32
    %c0_i32_8 = arith.constant 0 : i32
    %5 = tpu.memref_slice %arg1[%c0_i32_7, %c0_i32_8] : memref<1x2048xf32, #tpu.memory_space<any>> -> memref<1x2048xf32, #tpu.memory_space<any>>
    %6 = tpu.memref_slice %arg2[%c0_i32_4] : memref<1x!tpu.dma_semaphore, #tpu.memory_space<semaphore_mem>> -> memref<1x!tpu.dma_semaphore, #tpu.memory_space<semaphore_mem>>
    %7 = tpu.memref_squeeze %6 : memref<1x!tpu.dma_semaphore, #tpu.memory_space<semaphore_mem>> -> memref<!tpu.dma_semaphore, #tpu.memory_space<semaphore_mem>>
    tpu.wait_dma2 semaphore(%7 : memref<!tpu.dma_semaphore, #tpu.memory_space<semaphore_mem>>) src(%4 : memref<1x2048xf32, #tpu.memory_space<any>>) dst(%5 : memref<1x2048xf32, #tpu.memory_space<any>>)
    return
  }
}

</mosaic_0001>

<llo_original>
// kernel: tpu_custom_call.1
$region0: #{tpu_custom_call.1}
  #allocation0 [shape = 'u32[]', space=smem, size = 0x4, offset = 0x4, fixed_abs, tag = 'smem constant byte address 0x4 - core index']
  #allocation1 [shape = 'u32[144,128]{1,0:T(1,128)}', space=vmem, size = 0x12000, scoped, tag = 'internal scratch']
  #allocation2 [shape = 's32[1]{0}', space=sflag, size = 0x4, scoped, tag = 'scratch operand']
  #allocation3 [shape = 's32[]', space=sflag, size = 0x4, offset = 0, fixed_abs, tag = 'sflag constant byte address 0x0 - dummy sync flag']
  #allocation4 [shape = 'u32[0]{0}', space=smem, size = 0, offset = 0, fixed_abs, tag = 'smem constant byte address 0x0 - null']
  %s0 = inlined_call_operand.hbm [shape: f32[1,2048], index: 0, kind: input, shape index: {}]
  %s1 = inlined_call_operand.hbm [shape: f32[1,2048], index: 1, kind: output, shape index: {}]
  %s2 = sld [smem:[#allocation0]]
  $region2: #{tpu_custom_call.1} parent=0
    _
  %s4 = ssub.s32 1, %s2
  %s5 = scalar_select 0, %s4, %s2
  %s7 = sshll.u32 1, 14
  %s8 = sxor.u32 4294967295, %s7
  %12 = dma.general %s0, 256, %s1, [#allocation2], 131072, [#allocation4], 0, 0
  %s13 = smul.u32 1, 16
  %s14 = sshll.u32 %s13, 4
  %15 = dma.done [#allocation2], %s14
  %16 = vsyncmov [#allocation2]
  %s17 = vpop.sfrf %16
  %p18 = scmp.eq.s32.totalorder %s17, 0
  %p19 = pneg %p18
  %21 = shalt.err (%p19)

</llo_original>
